<compile_context>
chip_gen: v5e
topology: v5e:2x2
jax: 0.10.0
libtpu: 0.0.40
codegen_flags: <defaults>
</compile_context>

<pallas_src>
import math

import numpy as np
import jax
import jax.numpy as jnp
from jax.experimental import pallas as pl
from jax.experimental.pallas import tpu as pltpu

VMEM_LIMIT = 48 * 1024 * 1024   # fits every generation (v7x physical = 64 MiB)
NEG_INF = -1e30


def _tile(n, target):
    """Largest multiple-of-8 tile <= target that divides n (n itself if small)."""
    assert n % 8 == 0, n
    if n <= target:
        return n
    t = (target // 8) * 8
    while n % t:
        t -= 8
    return t


def _cparams(n_parallel, n_arbitrary=0):
    return pltpu.CompilerParams(
        dimension_semantics=("parallel",) * n_parallel
        + ("arbitrary",) * n_arbitrary,
        vmem_limit_bytes=VMEM_LIMIT)


# ----------------------------------------------------------------------------
# Kernel 1: fused modulated LayerNorm:  LN(x) * (1 + scale) + shift
# ----------------------------------------------------------------------------
def modulated_layernorm(x, shift, scale, *, eps, out_dtype=jnp.bfloat16,
                        tl_target=512):
    """x: [B, L, C] f32; shift/scale: [B, 1, C] f32 -> [B, L, C] out_dtype."""
    B, L, C = x.shape
    TL = _tile(L, tl_target)
    inv_c = 1.0 / C

    def kernel(x_ref, sh_ref, sc_ref, o_ref):
        xv = x_ref[...].astype(jnp.float32)                       # (TL, C)
        # one-pass statistics: mean and E[x^2]
        mean = jnp.sum(xv, axis=-1, keepdims=True) * inv_c
        meansq = jnp.sum(xv * xv, axis=-1, keepdims=True) * inv_c
        var = jnp.maximum(meansq - mean * mean, 0.0)
        xn = (xv - mean) * jax.lax.rsqrt(var + eps)
        o_ref[...] = (xn * (1.0 + sc_ref[...]) + sh_ref[...]).astype(o_ref.dtype)

    return pl.pallas_call(
        kernel,
        out_shape=jax.ShapeDtypeStruct((B, L, C), out_dtype),
        grid_spec=pltpu.PrefetchScalarGridSpec(
            num_scalar_prefetch=0,
            grid=(B, L // TL),
            in_specs=[
                pl.BlockSpec((None, TL, C), lambda b, l: (b, l, 0)),
                pl.BlockSpec((None, 1, C), lambda b, l: (b, 0, 0)),
                pl.BlockSpec((None, 1, C), lambda b, l: (b, 0, 0)),
            ],
            out_specs=pl.BlockSpec((None, TL, C), lambda b, l: (b, l, 0)),
        ),
        compiler_params=_cparams(2),
    )(x, shift, scale)


# ----------------------------------------------------------------------------
# Kernel 2: fused linear:  out = residual + act(norm(x @ w + b)) * gate
# ----------------------------------------------------------------------------
def fused_linear(x, w_t, b, *, rms_w=None, rope=None, gelu=False,
                 residual=None, gate=None, eps=1e-6,
                 out_dtype=jnp.bfloat16, tl_target=512):
    """x: [B,L,Cin] bf16, w_t: [Cin,Cout] bf16 (resident), b: [1,Cout] f32.

    rms_w [1,Cout] fuses WanRMSNorm; rope=(cos,sin) [B,L,Cout] fuses rotate-half
    RoPE (split-halves layout); gelu fuses tanh-GELU; residual [B,L,Cout] f32 and
    gate [B,1,Cout] f32 fuse the gated residual add.
    """
    B, L, Cin = x.shape
    Cout = w_t.shape[1]
    TL = _tile(L, tl_target)
    use_rms = rms_w is not None
    use_rope = rope is not None
    use_res = residual is not None
    use_gate = gate is not None
    assert not (use_gate and not use_res)
    half = Cout // 2

    def kernel(*refs):
        it = iter(refs)
        x_ref = next(it); w_ref = next(it); b_ref = next(it)
        g_ref = next(it) if use_rms else None
        cos_ref = next(it) if use_rope else None
        sin_ref = next(it) if use_rope else None
        r_ref = next(it) if use_res else None
        gt_ref = next(it) if use_gate else None
        o_ref = next(it)

        y = jnp.dot(x_ref[...], w_ref[...],
                    preferred_element_type=jnp.float32) + b_ref[...]
        if use_rms:
            ms = jnp.mean(y * y, axis=-1, keepdims=True)
            y = y * jax.lax.rsqrt(ms + eps) * g_ref[...]
        if use_rope:
            # rotate-half RoPE in the [real-half | imag-half] feature layout
            y = y * cos_ref[...] + pltpu.roll(y, half, 1) * sin_ref[...]
        if gelu:
            c = 0.7978845608028654      # sqrt(2/pi), tanh-approx GELU
            y = 0.5 * y * (1.0 + jnp.tanh(c * (y + 0.044715 * (y * y * y))))
        if use_res:
            if use_gate:
                y = y * gt_ref[...]
            y = r_ref[...] + y
        o_ref[...] = y.astype(o_ref.dtype)

    in_specs = [
        pl.BlockSpec((None, TL, Cin), lambda b_, l: (b_, l, 0)),
        pl.BlockSpec((Cin, Cout), lambda b_, l: (0, 0)),       # resident weight
        pl.BlockSpec((1, Cout), lambda b_, l: (0, 0)),
    ]
    args = [x, w_t, b]
    if use_rms:
        in_specs.append(pl.BlockSpec((1, Cout), lambda b_, l: (0, 0)))
        args.append(rms_w)
    if use_rope:
        in_specs += [pl.BlockSpec((None, TL, Cout), lambda b_, l: (b_, l, 0))] * 2
        args += [rope[0], rope[1]]
    if use_res:
        in_specs.append(pl.BlockSpec((None, TL, Cout), lambda b_, l: (b_, l, 0)))
        args.append(residual)
    if use_gate:
        in_specs.append(pl.BlockSpec((None, 1, Cout), lambda b_, l: (b_, 0, 0)))
        args.append(gate)

    return pl.pallas_call(
        kernel,
        out_shape=jax.ShapeDtypeStruct((B, L, Cout), out_dtype),
        grid_spec=pltpu.PrefetchScalarGridSpec(
            num_scalar_prefetch=0,
            grid=(B, L // TL),
            in_specs=in_specs,
            out_specs=pl.BlockSpec((None, TL, Cout), lambda b_, l: (b_, l, 0)),
        ),
        compiler_params=_cparams(2),
    )(*args)


# ----------------------------------------------------------------------------
# Kernel 3: flash-style attention with key-length masking
# ----------------------------------------------------------------------------
def masked_flash_attention(q, k, v, k_lens, *, scale, out_dtype=jnp.bfloat16,
                           tq_target=256, tk_target=512):
    """q: [B,H,Lq,d] bf16, k/v: [B,H,Lk,d] bf16, k_lens: [B] int32 -> [B,H,Lq,d]."""
    B, H, Lq, d = q.shape
    Lk = k.shape[2]
    TQ = _tile(Lq, tq_target)
    TK = _tile(Lk, tk_target)
    nk = Lk // TK

    def kernel(klen_ref, q_ref, k_ref, v_ref, o_ref, m_sc, l_sc, acc_sc):
        b = pl.program_id(0)
        kk = pl.program_id(3)

        @pl.when(kk == 0)
        def _():
            m_sc[...] = jnp.full_like(m_sc, NEG_INF)
            l_sc[...] = jnp.zeros_like(l_sc)
            acc_sc[...] = jnp.zeros_like(acc_sc)

        qv = q_ref[...]                        # (TQ, d) bf16
        kv = k_ref[...]                        # (TK, d) bf16
        vv = v_ref[...]                        # (TK, d) bf16

        s = jax.lax.dot_general(qv, kv, (((1,), (1,)), ((), ())),
                                preferred_element_type=jnp.float32) * scale
        col = jax.lax.broadcasted_iota(jnp.int32, s.shape, 1) + kk * TK
        s = jnp.where(col < klen_ref[b], s, NEG_INF)

        m_prev = m_sc[...]
        m_new = jnp.maximum(m_prev, jnp.max(s, axis=-1, keepdims=True))
        alpha = jnp.exp(m_prev - m_new)
        p = jnp.exp(s - m_new)
        l_sc[...] = alpha * l_sc[...] + jnp.sum(p, axis=-1, keepdims=True)
        acc_sc[...] = alpha * acc_sc[...] + jnp.dot(
            p.astype(vv.dtype), vv, preferred_element_type=jnp.float32)
        m_sc[...] = m_new

        @pl.when(kk == nk - 1)
        def _():
            o_ref[...] = (acc_sc[...] *
                          pl.reciprocal(l_sc[...], approx=True)).astype(o_ref.dtype)

    return pl.pallas_call(
        kernel,
        out_shape=jax.ShapeDtypeStruct((B, H, Lq, d), out_dtype),
        grid_spec=pltpu.PrefetchScalarGridSpec(
            num_scalar_prefetch=1,
            grid=(B, H, Lq // TQ, nk),
            in_specs=[
                pl.BlockSpec((None, None, TQ, d),
                             lambda b, h, qi, kk, kl: (b, h, qi, 0)),
                pl.BlockSpec((None, None, TK, d),
                             lambda b, h, qi, kk, kl: (b, h, kk, 0)),
                pl.BlockSpec((None, None, TK, d),
                             lambda b, h, qi, kk, kl: (b, h, kk, 0)),
            ],
            out_specs=pl.BlockSpec((None, None, TQ, d),
                                   lambda b, h, qi, kk, kl: (b, h, qi, 0)),
            scratch_shapes=[
                pltpu.VMEM((TQ, 1), jnp.float32),
                pltpu.VMEM((TQ, 1), jnp.float32),
                pltpu.VMEM((TQ, d), jnp.float32),
            ],
        ),
        compiler_params=_cparams(3, 1),
    )(k_lens.astype(jnp.int32), q, k, v)


# ----------------------------------------------------------------------------
# Host-side RoPE tables (data-dependent on grid_sizes, like the torch code's
# grid_sizes.tolist() indexing).  The rotation itself is applied in-kernel.
# ----------------------------------------------------------------------------
def _rope_base_tables(grid_sizes, seq_lens, L, head_dim, theta=10000.0):
    """cos/sin of the 3D (F,H,W) rotary angles, [B, L, head_dim//2] f32.
    Positions >= seq_len keep the identity rotation (cos=1, sin=0)."""
    dh = head_dim // 2
    n_f = dh - 2 * (dh // 3)
    n_h = dh // 3
    n_w = dh // 3
    inv = lambda n: 1.0 / (theta ** (np.arange(n, dtype=np.float64) / n))
    inv_f, inv_h, inv_w = inv(n_f), inv(n_h), inv(n_w)

    grid_sizes = np.asarray(grid_sizes)
    seq_lens = np.asarray(seq_lens)
    B = grid_sizes.shape[0]
    ang = np.zeros((B, L, dh), np.float64)
    valid = np.zeros((B, L, 1), bool)
    for b in range(B):
        f, h, w = (int(t) for t in grid_sizes[b])
        fi, hi, wi = np.meshgrid(np.arange(f), np.arange(h), np.arange(w),
                                 indexing="ij")
        a = np.concatenate([fi.reshape(-1, 1) * inv_f,
                            hi.reshape(-1, 1) * inv_h,
                            wi.reshape(-1, 1) * inv_w], axis=-1)
        n = min(int(seq_lens[b]), f * h * w, L)
        ang[b, :n] = a[:n]
        valid[b, :n] = True
    cos = np.where(valid, np.cos(ang), 1.0).astype(np.float32)
    sin = np.where(valid, np.sin(ang), 0.0).astype(np.float32)
    return jnp.asarray(cos), jnp.asarray(sin)


def build_rope_tables(grid_sizes, seq_lens, L, num_heads, head_dim,
                      theta=10000.0):
    """Kernel-layout tables [B, L, dim] for the split-halves rotate-half form."""
    cos_b, sin_b = _rope_base_tables(grid_sizes, seq_lens, L, head_dim, theta)
    cos_h = jnp.tile(cos_b, (1, 1, num_heads))
    sin_h = jnp.tile(sin_b, (1, 1, num_heads))
    cos_full = jnp.concatenate([cos_h, cos_h], axis=-1)
    sin_full = jnp.concatenate([-sin_h, sin_h], axis=-1)
    return cos_full, sin_full


def _rope_split_perm(num_heads, head_dim):
    """Column permutation: torch interleaved (re,im,re,im,...) per head ->
    global [real-half | imag-half] layout used by the q/k rope kernels."""
    dh = head_dim // 2
    half = np.arange(2)[:, None, None]
    h = np.arange(num_heads)[None, :, None]
    j = np.arange(dh)[None, None, :]
    return (h * head_dim + 2 * j + half).reshape(-1)


# ----------------------------------------------------------------------------
# WanAttentionBlock forward (Pallas path)
# ----------------------------------------------------------------------------
def wan_attention_block_forward(params, x, e, seq_lens, context, context_lens,
                                rope_cos, rope_sin, *, num_heads, eps=1e-6):
    """x: [B,L,C] f32, e: [B,6,C] f32, context: [B,Lc,C] f32."""
    # TODO(synk): sliding-window self-attention (window_size != (-1,-1)),
    # cross_attn_norm=True (affine LayerNorm) and the i2v cross-attn variant
    # (extra image k/v) are not implemented; this is the t2v default path.
    B, L, C = x.shape
    H = num_heads
    d = C // H
    scale = 1.0 / math.sqrt(d)
    perm = _rope_split_perm(H, d)

    f32, bf16 = jnp.float32, jnp.bfloat16
    wt = lambda w: jnp.asarray(w, f32).T.astype(bf16)       # torch [out,in] -> [in,out] bf16
    row = lambda v: jnp.asarray(v, f32).reshape(1, -1)

    # modulation + e -> 6 x [B, 1, C]
    e_all = jnp.asarray(params["modulation"], f32) + e.astype(f32)     # [B,6,C]
    e0, e1, e2, e3, e4, e5 = [e_all[:, i:i + 1, :] for i in range(6)]

    sa, ca, ffn = params["self_attn"], params["cross_attn"], params["ffn"]

    def split_qk(t):      # split-halves layout -> [B, H, L, d]
        return t.reshape(B, L, 2, H, d // 2).transpose(0, 3, 1, 2, 4) \
                .reshape(B, H, L, d)

    def split_v(t, Lt):   # standard layout -> [B, H, Lt, d]
        return t.reshape(B, Lt, H, d).transpose(0, 2, 1, 3)

    # ---- self-attention branch ---------------------------------------------
    h_mod = modulated_layernorm(x, e0, e1, eps=eps)                     # bf16

    wq = wt(sa["q_w"])[:, perm]; bq = row(sa["q_b"])[:, perm]
    gq = row(sa["norm_q"])[:, perm]
    wk = wt(sa["k_w"])[:, perm]; bk = row(sa["k_b"])[:, perm]
    gk = row(sa["norm_k"])[:, perm]

    q = fused_linear(h_mod, wq, bq, rms_w=gq, rope=(rope_cos, rope_sin), eps=eps)
    k = fused_linear(h_mod, wk, bk, rms_w=gk, rope=(rope_cos, rope_sin), eps=eps)
    v = fused_linear(h_mod, wt(sa["v_w"]), row(sa["v_b"]))

    attn = masked_flash_attention(split_qk(q), split_qk(k), split_v(v, L),
                                  seq_lens, scale=scale)                # [B,H,L,d]
    attn = attn.transpose(0, 2, 1, 3).reshape(B, L, C)

    x = fused_linear(attn, wt(sa["o_w"]), row(sa["o_b"]),
                     residual=x, gate=e2, out_dtype=f32)

    # ---- cross-attention branch (t2v, norm3 = Identity) ----------------------
    Lc = context.shape[1]
    ctx = context.astype(bf16)
    qc = fused_linear(x.astype(bf16), wt(ca["q_w"]), row(ca["q_b"]),
                      rms_w=row(ca["norm_q"]), eps=eps)
    kc = fused_linear(ctx, wt(ca["k_w"]), row(ca["k_b"]),
                      rms_w=row(ca["norm_k"]), eps=eps)
    vc = fused_linear(ctx, wt(ca["v_w"]), row(ca["v_b"]))

    attn_c = masked_flash_attention(split_v(qc, L), split_v(kc, Lc),
                                    split_v(vc, Lc), context_lens, scale=scale)
    attn_c = attn_c.transpose(0, 2, 1, 3).reshape(B, L, C)

    x = fused_linear(attn_c, wt(ca["o_w"]), row(ca["o_b"]),
                     residual=x, out_dtype=f32)

    # ---- FFN branch -----------------------------------------------------------
    # TODO(synk): for very large dim/ffn_dim the weights should additionally be
    # tiled over K/N with a VMEM accumulator instead of being held resident.
    h2 = modulated_layernorm(x, e3, e4, eps=eps)                        # bf16
    h2 = fused_linear(h2, wt(ffn["w1"]), row(ffn["b1"]), gelu=True)     # bf16
    x = fused_linear(h2, wt(ffn["w2"]), row(ffn["b2"]),
                     residual=x, gate=e5, out_dtype=f32)
    return x


# ----------------------------------------------------------------------------
# Pure-JAX f32 reference (mirrors the PyTorch forward)
# ----------------------------------------------------------------------------
def reference_forward(params, x, e, seq_lens, grid_sizes, context, context_lens,
                      *, num_heads, eps=1e-6):
    B, L, C = x.shape
    H = num_heads
    d = C // H
    dh = d // 2
    scale = 1.0 / math.sqrt(d)

    def layer_norm(t):
        mu = jnp.mean(t, axis=-1, keepdims=True)
        var = jnp.mean(jnp.square(t - mu), axis=-1, keepdims=True)
        return (t - mu) * jax.lax.rsqrt(var + eps)

    def rms_norm(t, g):
        return t * jax.lax.rsqrt(jnp.mean(t * t, axis=-1, keepdims=True) + eps) * g

    def linear(t, w, b):
        return jnp.einsum("blc,oc->blo", t, w) + b

    cos_b, sin_b = _rope_base_tables(grid_sizes, seq_lens, L, d)    # [B,L,dh]

    def rope(t):                      # t: [B, L, H, d] interleaved pairs
        tp = t.reshape(B, L, H, dh, 2)
        tr, ti = tp[..., 0], tp[..., 1]
        c = cos_b[:, :, None, :]
        s = sin_b[:, :, None, :]
        return jnp.stack([tr * c - ti * s, tr * s + ti * c],
                         axis=-1).reshape(B, L, H, d)

    def attention(q, k, v, k_lens):   # q [B,Lq,H,d], k/v [B,Lk,H,d]
        s = jnp.einsum("bqhd,bkhd->bhqk", q, k) * scale
        mask = (jnp.arange(k.shape[1])[None, :] <
                jnp.asarray(k_lens)[:, None])[:, None, None, :]
        s = jnp.where(mask, s, -jnp.inf)
        p = jax.nn.softmax(s, axis=-1)
        o = jnp.einsum("bhqk,bkhd->bqhd", p, v)
        return o.reshape(B, q.shape[1], C)

    mod = jnp.asarray(params["modulation"], jnp.float32) + e            # [B,6,C]
    ee = [mod[:, i:i + 1, :] for i in range(6)]
    sa, ca, ffn = params["self_attn"], params["cross_attn"], params["ffn"]

    # self attention
    h = layer_norm(x) * (1 + ee[1]) + ee[0]
    q = rms_norm(linear(h, sa["q_w"], sa["q_b"]), sa["norm_q"]).reshape(B, L, H, d)
    k = rms_norm(linear(h, sa["k_w"], sa["k_b"]), sa["norm_k"]).reshape(B, L, H, d)
    v = linear(h, sa["v_w"], sa["v_b"]).reshape(B, L, H, d)
    y = attention(rope(q), rope(k), v, seq_lens)
    x = x + linear(y, sa["o_w"], sa["o_b"]) * ee[2]

    # cross attention (norm3 = Identity)
    Lc = context.shape[1]
    qc = rms_norm(linear(x, ca["q_w"], ca["q_b"]), ca["norm_q"]).reshape(B, L, H, d)
    kc = rms_norm(linear(context, ca["k_w"], ca["k_b"]), ca["norm_k"]).reshape(B, Lc, H, d)
    vc = linear(context, ca["v_w"], ca["v_b"]).reshape(B, Lc, H, d)
    x = x + linear(attention(qc, kc, vc, context_lens), ca["o_w"], ca["o_b"])

    # ffn
    h = layer_norm(x) * (1 + ee[4]) + ee[3]
    h = jax.nn.gelu(linear(h, ffn["w1"], ffn["b1"]), approximate=True)
    x = x + linear(h, ffn["w2"], ffn["b2"]) * ee[5]
    return x


if __name__ == "__main__":
    B = 2
    dim = 128
    ffn_dim = 256
    num_heads = 4
    head_dim = dim // num_heads          # 32
    eps = 1e-6

    grid_sizes = np.array([[2, 4, 4], [2, 4, 3]], dtype=np.int32)   # (F, H, W)
    seq_lens_np = grid_sizes.prod(axis=1).astype(np.int32)          # [32, 24]
    L = int(seq_lens_np.max())                                      # 32
    Lc = 16
    context_lens_np = np.array([16, 10], dtype=np.int32)

    key = jax.random.PRNGKey(0)
    keys = iter(jax.random.split(key, 40))

    def nrm(shape, s=1.0):
        return jax.random.normal(next(keys), shape, dtype=jnp.float32) * s

    x = nrm((B, L, dim))
    e = nrm((B, 6, dim))
    context = nrm((B, Lc, dim))
    seq_lens = jnp.asarray(seq_lens_np)
    context_lens = jnp.asarray(context_lens_np)

    def attn_params():
        s = 1.0 / math.sqrt(dim)
        return {
            "q_w": nrm((dim, dim), s), "q_b": nrm((dim,), 0.02),
            "k_w": nrm((dim, dim), s), "k_b": nrm((dim,), 0.02),
            "v_w": nrm((dim, dim), s), "v_b": nrm((dim,), 0.02),
            "o_w": nrm((dim, dim), s), "o_b": nrm((dim,), 0.02),
            "norm_q": 1.0 + nrm((dim,), 0.02),
            "norm_k": 1.0 + nrm((dim,), 0.02),
        }

    params = {
        "modulation": nrm((1, 6, dim), 1.0 / math.sqrt(dim)),
        "self_attn": attn_params(),
        "cross_attn": attn_params(),
        "ffn": {
            "w1": nrm((ffn_dim, dim), 1.0 / math.sqrt(dim)),
            "b1": nrm((ffn_dim,), 0.02),
            "w2": nrm((dim, ffn_dim), 1.0 / math.sqrt(ffn_dim)),
            "b2": nrm((dim,), 0.02),
        },
    }

    rope_cos, rope_sin = build_rope_tables(grid_sizes, seq_lens_np, L,
                                           num_heads, head_dim)

    out = wan_attention_block_forward(
        params, x, e, seq_lens, context, context_lens, rope_cos, rope_sin,
        num_heads=num_heads, eps=eps)
    out = jax.block_until_ready(out)

    ref = reference_forward(params, x, e, seq_lens_np, grid_sizes, context,
                            context_lens_np, num_heads=num_heads, eps=eps)
    ref = jax.block_until_ready(ref)

    assert out.shape == (B, L, dim), out.shape
    max_err = float(jnp.max(jnp.abs(out - ref)))
    rel_err = float(jnp.linalg.norm(out - ref) / jnp.linalg.norm(ref))
    assert rel_err < 2e-2 and max_err < 2.5e-1, (rel_err, max_err)

    print("KERNEL_OK")
</pallas_src>

<mosaic_0001>
module attributes {stable_mosaic.version = 11 : i64} {
  func.func @kernel(%arg0: i32, %arg1: i32, %arg2: memref<1x32x128xf32, #tpu.memory_space<vmem>>, %arg3: memref<1x1x128xf32, #tpu.memory_space<vmem>>, %arg4: memref<1x1x128xf32, #tpu.memory_space<vmem>>, %arg5: memref<1x32x128xbf16, #tpu.memory_space<vmem>>) attributes {dimension_semantics = [#tpu.dimension_semantics<parallel>, #tpu.dimension_semantics<parallel>], iteration_bounds = array<i64: 2, 1>, scalar_prefetch = 0 : i64, scratch_operands = 0 : i64, tpu.core_type = #tpu.core_type<tc>, window_params = [{transform_indices = @transform_0, window_bounds = array<i64: 1, 32, 128>}, {transform_indices = @transform_1, window_bounds = array<i64: 1, 1, 128>}, {transform_indices = @transform_2, window_bounds = array<i64: 1, 1, 128>}, {transform_indices = @transform_3, window_bounds = array<i64: 1, 32, 128>}]} {
    %c0 = arith.constant 0 : index
    %c0_0 = arith.constant 0 : index
    %c0_1 = arith.constant 0 : index
    %0 = vector.load %arg2[%c0, %c0_0, %c0_1] : memref<1x32x128xf32, #tpu.memory_space<vmem>>, vector<1x32x128xf32>
    %1 = vector.shape_cast %0 : vector<1x32x128xf32> to vector<32x128xf32>
    %cst = arith.constant dense<0.000000e+00> : vector<32xf32>
    %2 = vector.multi_reduction <add>, %1, %cst [1] : vector<32x128xf32> to vector<32xf32>
    %3 = vector.shape_cast %2 : vector<32xf32> to vector<32x1xf32>
    %cst_2 = arith.constant 7.812500e-03 : f32
    %4 = vector.broadcast %cst_2 : f32 to vector<32x1xf32>
    %5 = arith.mulf %3, %4 : vector<32x1xf32>
    %6 = arith.mulf %1, %1 : vector<32x128xf32>
    %cst_3 = arith.constant dense<0.000000e+00> : vector<32xf32>
    %7 = vector.multi_reduction <add>, %6, %cst_3 [1] : vector<32x128xf32> to vector<32xf32>
    %8 = vector.shape_cast %7 : vector<32xf32> to vector<32x1xf32>
    %cst_4 = arith.constant 7.812500e-03 : f32
    %9 = vector.broadcast %cst_4 : f32 to vector<32x1xf32>
    %10 = arith.mulf %8, %9 : vector<32x1xf32>
    %11 = arith.mulf %5, %5 : vector<32x1xf32>
    %12 = arith.subf %10, %11 : vector<32x1xf32>
    %cst_5 = arith.constant 0.000000e+00 : f32
    %13 = vector.broadcast %cst_5 : f32 to vector<32x1xf32>
    %14 = arith.maximumf %12, %13 : vector<32x1xf32>
    %15 = vector.broadcast %5 : vector<32x1xf32> to vector<32x128xf32>
    %16 = arith.subf %1, %15 : vector<32x128xf32>
    %cst_6 = arith.constant 9.99999997E-7 : f32
    %17 = vector.broadcast %cst_6 : f32 to vector<32x1xf32>
    %18 = arith.addf %14, %17 : vector<32x1xf32>
    %19 = math.rsqrt %18 : vector<32x1xf32>
    %20 = vector.broadcast %19 : vector<32x1xf32> to vector<32x128xf32>
    %21 = arith.mulf %16, %20 : vector<32x128xf32>
    %c0_7 = arith.constant 0 : index
    %c0_8 = arith.constant 0 : index
    %c0_9 = arith.constant 0 : index
    %22 = vector.load %arg4[%c0_7, %c0_8, %c0_9] : memref<1x1x128xf32, #tpu.memory_space<vmem>>, vector<1x1x128xf32>
    %23 = vector.shape_cast %22 : vector<1x1x128xf32> to vector<1x128xf32>
    %cst_10 = arith.constant 1.000000e+00 : f32
    %24 = vector.broadcast %cst_10 : f32 to vector<1x128xf32>
    %25 = arith.addf %24, %23 : vector<1x128xf32>
    %26 = vector.broadcast %25 : vector<1x128xf32> to vector<32x128xf32>
    %27 = arith.mulf %21, %26 : vector<32x128xf32>
    %c0_11 = arith.constant 0 : index
    %c0_12 = arith.constant 0 : index
    %c0_13 = arith.constant 0 : index
    %28 = vector.load %arg3[%c0_11, %c0_12, %c0_13] : memref<1x1x128xf32, #tpu.memory_space<vmem>>, vector<1x1x128xf32>
    %29 = vector.shape_cast %28 : vector<1x1x128xf32> to vector<1x128xf32>
    %30 = vector.broadcast %29 : vector<1x128xf32> to vector<32x128xf32>
    %31 = arith.addf %27, %30 : vector<32x128xf32>
    %32 = arith.truncf %31 : vector<32x128xf32> to vector<32x128xbf16>
    %c0_14 = arith.constant 0 : index
    %c0_15 = arith.constant 0 : index
    %c0_16 = arith.constant 0 : index
    %33 = vector.load %arg5[%c0_14, %c0_15, %c0_16] : memref<1x32x128xbf16, #tpu.memory_space<vmem>>, vector<1x32x128xbf16>
    %34 = vector.shape_cast %33 : vector<1x32x128xbf16> to vector<32x128xbf16>
    %35 = vector.shape_cast %32 : vector<32x128xbf16> to vector<1x32x128xbf16>
    tpu.vector_store %arg5[%c0_14, %c0_15, %c0_16], %35 {strides = array<i32>} : memref<1x32x128xbf16, #tpu.memory_space<vmem>>, vector<1x32x128xbf16>,
    return
  }
  func.func @transform_0(%arg0: i32, %arg1: i32) -> (i32, i32, i32) {
    %c0_i32 = arith.constant 0 : i32
    %c0_i32_0 = arith.constant 0 : i32
    return %arg0, %arg1, %c0_i32 : i32, i32, i32
  }
  func.func @transform_1(%arg0: i32, %arg1: i32) -> (i32, i32, i32) {
    %c0_i32 = arith.constant 0 : i32
    %c0_i32_0 = arith.constant 0 : i32
    %c0_i32_1 = arith.constant 0 : i32
    return %arg0, %c0_i32, %c0_i32_0 : i32, i32, i32
  }
  func.func @transform_2(%arg0: i32, %arg1: i32) -> (i32, i32, i32) {
    %c0_i32 = arith.constant 0 : i32
    %c0_i32_0 = arith.constant 0 : i32
    %c0_i32_1 = arith.constant 0 : i32
    return %arg0, %c0_i32, %c0_i32_0 : i32, i32, i32
  }
  func.func @transform_3(%arg0: i32, %arg1: i32) -> (i32, i32, i32) {
    %c0_i32 = arith.constant 0 : i32
    %c0_i32_0 = arith.constant 0 : i32
    return %arg0, %arg1, %c0_i32 : i32, i32, i32
  }
}

</mosaic_0001>

<llo_original>
// kernel: tpu_custom_call.1
$region0: #{tpu_custom_call.1}
  #allocation0 [shape = 'u32[]', space=smem, size = 0x4, offset = 0x4, fixed_abs, tag = 'smem constant byte address 0x4 - core index']
  #allocation1 [shape = 'u32[72,128]{1,0:T(1,128)}', space=vmem, size = 0x9000, scoped, tag = 'internal scratch']
  %s0 = inlined_call_operand.hbm [shape: f32[2,32,128], index: 0, kind: input, shape index: {}]
  %s1 = inlined_call_operand.hbm [shape: f32[2,1,128], index: 1, kind: input, shape index: {}]
  %s2 = inlined_call_operand.hbm [shape: f32[2,1,128], index: 2, kind: input, shape index: {}]
  %s3 = inlined_call_operand.hbm [shape: bf16[2,32,128], index: 3, kind: output, shape index: {}]
  %s4 = sld [smem:[#allocation0]]
  $region57: #{tpu_custom_call.1} parent=0
    _
  %s6 = ssub.s32 1, %s4
  %s7 = scalar_select 0, %s6, %s4
  $region1: #{tpu_custom_call.1} parent=0
    #allocation2 [shape = 'u8[32768]{0}', space=vmem, size = 0x8000, scoped, tag = 'input window, operand 0']
    #allocation3 [shape = 's32[2]{0}', space=sflag, size = 0x8, scoped, tag = 'scoped memory for tpu_custom_call.1']
    #allocation4 [shape = 's32[2]{0}', space=sflag, size = 0x8, scoped, tag = 'scoped memory for tpu_custom_call.1']
    #allocation5 [shape = 'u8[1024]{0}', space=vmem, size = 0x400, scoped, tag = 'input window, operand 1']
    #allocation6 [shape = 's32[2]{0}', space=sflag, size = 0x8, scoped, tag = 'scoped memory for tpu_custom_call.1']
    #allocation7 [shape = 'u8[1024]{0}', space=vmem, size = 0x400, scoped, tag = 'input window, operand 2']
    #allocation8 [shape = 'u8[16384]{0}', space=vmem, size = 0x4000, scoped, tag = 'output window, operand 0']
    %8 = vsyncpa [#allocation3], 0
    %s9 = scalar_lea.sflag [#allocation3], 1
    %10 = vsyncpa %s9, 0
    %11 = vsyncpa [#allocation6], 0
    %s12 = scalar_lea.sflag [#allocation6], 1
    %13 = vsyncpa %s12, 0
    %14 = vsyncpa [#allocation4], 0
    %s15 = scalar_lea.sflag [#allocation4], 1
    %16 = vsyncpa %s15, 0
    loop: start=0, step=1, limit=4
    $region2: #{tpu_custom_call.1} parent=1 // loop_pre_header
      _
    $region3: #{tpu_custom_call.1} parent=1 // loop_header
      %s18 = sphi 0, %s22
      %p19 = scmp.ge.s32.totalorder %s18, 4
      %s25 = sphi 0, %s37
      %s26 = sphi 0, %s33
      %s27 = sphi 0, %s25
      %s28 = sphi 0, %s26
      %s29 = sphi 0, %s27
      %s30 = sphi 0, %s28
      %s42 = sphi 0, %s44
      %s45 = sphi 0, %s42
      %s46 = sphi 0, %s45
      %s62 = sphi 0, %s46
      %s68 = sphi 0, %s70
      %s71 = sphi 0, %s68
      %s72 = sphi 0, %s71
      %s88 = sphi 0, %s72
      %s94 = sphi 0, %s96
      %s97 = sphi 0, %s94
      %s98 = sphi 0, %s97
      %s114 = sphi 0, %s98
      %s122 = sphi 0, %s124
      %s125 = sphi 0, %s122
      %s126 = sphi 0, %s125
      %s142 = sphi 0, %s126
    $region4: #{tpu_custom_call.1} parent=1 // loop_header_branch
      %21 = sbr.rel (%p19) target = $region8
    $region5: #{tpu_custom_call.1} parent=1 // loop_body
      %s23 = ssub.s32 %s18, 1
      %s24 = ssub.s32 %s18, 2
      %s31 = sadd.s32 1, %s26
      %p32 = scmp.ge.s32.totalorder %s31, 1
      %s33 = scalar_select %p32, 0, %s31
      %s34 = sadd.s32 1, %s25
      %s35 = scalar_select %p32, %s34, %s25
      %p36 = scmp.ge.s32.totalorder %s35, 2
      %s37 = scalar_select %p36, 0, %s35
      %s38 = ssub.s32 %s25, %s37
      %s39 = ssub.s32 %s26, %s33
      %s40 = sor.u32 %s38, %s39
      %p41 = scmp.eq.s32.totalorder %s40, 0
      %s43 = sadd.s32 %s42, 1
      %s44 = scalar_select %p41, %s42, %s43
      %p47 = pneg %p41
      %p48 = scmp.eq.s32.totalorder %s18, 1
      %p49 = por %p47, %p48
      %p50 = scmp.ne.s32.totalorder %s42, %s45
      %p51 = scmp.eq.s32.totalorder %s18, 0
      %p52 = por %p50, %p51
      %p53 = scmp.ne.s32.totalorder %s42, %s45
      %p54 = scmp.eq.s32.totalorder %s23, 1
      %p55 = por %p53, %p54
      %p56 = scmp.ne.s32.totalorder %s45, %s46
      %p57 = scmp.eq.s32.totalorder %s23, 0
      %p58 = por %p56, %p57
      %p59 = scmp.ne.s32.totalorder %s45, %s46
      %p60 = scmp.eq.s32.totalorder %s24, 1
      %p61 = por %p59, %p60
      %p63 = scmp.ne.s32.totalorder %s46, %s62
      %p64 = scmp.eq.s32.totalorder %s24, 0
      %p65 = por %p63, %p64
      %s66 = ssub.s32 %s25, %s37
      %p67 = scmp.eq.s32.totalorder %s66, 0
      %s69 = sadd.s32 %s68, 1
      %s70 = scalar_select %p67, %s68, %s69
      %p73 = pneg %p67
      %p74 = scmp.eq.s32.totalorder %s18, 1
      %p75 = por %p73, %p74
      %p76 = scmp.ne.s32.totalorder %s68, %s71
      %p77 = scmp.eq.s32.totalorder %s18, 0
      %p78 = por %p76, %p77
      %p79 = scmp.ne.s32.totalorder %s68, %s71
      %p80 = scmp.eq.s32.totalorder %s23, 1
      %p81 = por %p79, %p80
      %p82 = scmp.ne.s32.totalorder %s71, %s72
      %p83 = scmp.eq.s32.totalorder %s23, 0
      %p84 = por %p82, %p83
      %p85 = scmp.ne.s32.totalorder %s71, %s72
      %p86 = scmp.eq.s32.totalorder %s24, 1
      %p87 = por %p85, %p86
      %p89 = scmp.ne.s32.totalorder %s72, %s88
      %p90 = scmp.eq.s32.totalorder %s24, 0
      %p91 = por %p89, %p90
      %s92 = ssub.s32 %s25, %s37
      %p93 = scmp.eq.s32.totalorder %s92, 0
      %s95 = sadd.s32 %s94, 1
      %s96 = scalar_select %p93, %s94, %s95
      %p99 = pneg %p93
      %p100 = scmp.eq.s32.totalorder %s18, 1
      %p101 = por %p99, %p100
      %p102 = scmp.ne.s32.totalorder %s94, %s97
      %p103 = scmp.eq.s32.totalorder %s18, 0
      %p104 = por %p102, %p103
      %p105 = scmp.ne.s32.totalorder %s94, %s97
      %p106 = scmp.eq.s32.totalorder %s23, 1
      %p107 = por %p105, %p106
      %p108 = scmp.ne.s32.totalorder %s97, %s98
      %p109 = scmp.eq.s32.totalorder %s23, 0
      %p110 = por %p108, %p109
      %p111 = scmp.ne.s32.totalorder %s97, %s98
      %p112 = scmp.eq.s32.totalorder %s24, 1
      %p113 = por %p111, %p112
      %p115 = scmp.ne.s32.totalorder %s98, %s114
      %p116 = scmp.eq.s32.totalorder %s24, 0
      %p117 = por %p115, %p116
      %s118 = ssub.s32 %s25, %s37
      %s119 = ssub.s32 %s26, %s33
      %s120 = sor.u32 %s118, %s119
      %p121 = scmp.eq.s32.totalorder %s120, 0
      %s123 = sadd.s32 %s122, 1
      %s124 = scalar_select %p121, %s122, %s123
      %p127 = pneg %p121
      %p128 = scmp.eq.s32.totalorder %s18, 1
      %p129 = por %p127, %p128
      %p130 = scmp.ne.s32.totalorder %s122, %s125
      %p131 = scmp.eq.s32.totalorder %s18, 0
      %p132 = por %p130, %p131
      %p133 = scmp.ne.s32.totalorder %s122, %s125
      %p134 = scmp.eq.s32.totalorder %s23, 1
      %p135 = por %p133, %p134
      %p136 = scmp.ne.s32.totalorder %s125, %s126
      %p137 = scmp.eq.s32.totalorder %s23, 0
      %p138 = por %p136, %p137
      %p139 = scmp.ne.s32.totalorder %s125, %s126
      %p140 = scmp.eq.s32.totalorder %s24, 1
      %p141 = por %p139, %p140
      %p143 = scmp.ne.s32.totalorder %s126, %s142
      %p144 = scmp.eq.s32.totalorder %s24, 0
      %p145 = por %p143, %p144
      %p146 = scmp.le.s32.totalorder 1, %s18
      %p147 = scmp.lt.s32.totalorder %s18, 3
      %p148 = pnand %p146, %p147
      %p149 = pneg %p148
      // Predicated region
      $region9: #{tpu_custom_call.1} parent=5 // pred_check
        _
      $region10: #{tpu_custom_call.1} parent=5 // pred_check_branch
        %151 = sbr.rel (%p148) target = $region12
      $region11: #{tpu_custom_call.1} parent=5 // pred_region
        %s152 = ssub.s32 %s18, 1
      $region12: #{tpu_custom_call.1} parent=5 // pred_fallthru
        _
      %p153 = scmp.lt.s32.totalorder %s18, 2
      // Predicated region
      $region13: #{tpu_custom_call.1} parent=5 // pred_check
        %p154 = pneg %p153
      $region14: #{tpu_custom_call.1} parent=5 // pred_check_branch
        %156 = sbr.rel (%p154) target = $region16
      $region15: #{tpu_custom_call.1} parent=5 // pred_region
        // Predicated region
        $region17: #{tpu_custom_call.1} parent=15 // pred_check
          %p157 = pneg %p52
        $region18: #{tpu_custom_call.1} parent=15 // pred_check_branch
          %159 = sbr.rel (%p157) target = $region20
        $region19: #{tpu_custom_call.1} parent=15 // pred_region
          %s160 = sand.u32 %s42, 1
          %s161 = scalar_lea.sflag [#allocation3], %s160
          %s162 = sand.u32 %s42, 1
          %s163 = smul.addr %s162, 32
          %s164 = scalar_lea.vmem [#allocation2], %s163
          %s165 = smul.u32 4, %s26
          %167 = vsyncadd %s161, 0
          %s168 = smul.addr %s25, 4
          %s169 = sadd.s32 %s165, %s168
          %s170 = smul.addr %s169, 8
          %s171 = scalar_lea.hbm %s0, %s170
          %s172 = sshll.u32 %s171, 4
          %s173 = int_to_ptr.hbm [resolvable:$true] %s172
          %s174 = sshll.u32 %s164, 4
          %s175 = int_to_ptr.vmem [resolvable:$true] %s174
          %180 = dma.hbm_to_vmem [thread:$0]  %s173, 512, %s175, %s161, 128, 128, 8
        $region20: #{tpu_custom_call.1} parent=15 // pred_fallthru
          _
        // Predicated region
        $region21: #{tpu_custom_call.1} parent=15 // pred_check
          %p181 = pneg %p78
        $region22: #{tpu_custom_call.1} parent=15 // pred_check_branch
          %183 = sbr.rel (%p181) target = $region24
        $region23: #{tpu_custom_call.1} parent=15 // pred_region
          %s184 = sand.u32 %s18, 1
          %s185 = scalar_lea.sflag [#allocation6], %s184
          %s186 = sand.u32 %s68, 1
          %s187 = scalar_lea.vmem [#allocation5], %s186
          %189 = vsyncadd %s185, 0
          %s190 = scalar_lea.hbm %s1, %s25
          %s192 = sshll.u32 %s190, 4
          %s193 = int_to_ptr.hbm [resolvable:$true] %s192
          %s194 = sshll.u32 %s187, 4
          %s195 = int_to_ptr.vmem [resolvable:$true] %s194
          %197 = dma.hbm_to_vmem [thread:$0]  %s193, 16, %s195, %s185
        $region24: #{tpu_custom_call.1} parent=15 // pred_fallthru
          _
        // Predicated region
        $region25: #{tpu_custom_call.1} parent=15 // pred_check
          %p198 = pneg %p104
        $region26: #{tpu_custom_call.1} parent=15 // pred_check_branch
          %200 = sbr.rel (%p198) target = $region28
        $region27: #{tpu_custom_call.1} parent=15 // pred_region
          %s201 = sand.u32 %s18, 1
          %s202 = scalar_lea.sflag [#allocation6], %s201
          %s203 = sand.u32 %s94, 1
          %s204 = scalar_lea.vmem [#allocation7], %s203
          %206 = vsyncadd %s202, 0
          %s207 = scalar_lea.hbm %s2, %s25
          %s209 = sshll.u32 %s207, 4
          %s210 = int_to_ptr.hbm [resolvable:$true] %s209
          %s211 = sshll.u32 %s204, 4
          %s212 = int_to_ptr.vmem [resolvable:$true] %s211
          %214 = dma.hbm_to_vmem [thread:$0]  %s210, 16, %s212, %s202
        $region28: #{tpu_custom_call.1} parent=15 // pred_fallthru
          _
      $region16: #{tpu_custom_call.1} parent=5 // pred_fallthru
        _
      %p215 = scmp.le.s32.totalorder 1, %s18
      %p216 = scmp.lt.s32.totalorder %s18, 3
      %p217 = pnand %p215, %p216
      %p218 = pneg %p217
      // Predicated region
      $region29: #{tpu_custom_call.1} parent=5 // pred_check
        _
      $region30: #{tpu_custom_call.1} parent=5 // pred_check_branch
        %220 = sbr.rel (%p217) target = $region32
      $region31: #{tpu_custom_call.1} parent=5 // pred_region
        %s221 = ssub.s32 %s18, 1
        %s222 = sand.u32 %s45, 1
        %s223 = scalar_lea.sflag [#allocation3], %s222
        %s224 = sand.u32 %s45, 1
        %s225 = smul.addr %s224, 32
        %s226 = scalar_lea.vmem [#allocation2], %s225
        // Predicated region
        $region33: #{tpu_custom_call.1} parent=31 // pred_check
          %p227 = pneg %p58
        $region34: #{tpu_custom_call.1} parent=31 // pred_check_branch
          %229 = sbr.rel (%p227) target = $region36
        $region35: #{tpu_custom_call.1} parent=31 // pred_region
          %231 = dma.done %s223, 512
        $region36: #{tpu_custom_call.1} parent=31 // pred_fallthru
          _
        %s232 = sand.u32 %s23, 1
        %s233 = scalar_lea.sflag [#allocation6], %s232
        %s234 = sand.u32 %s71, 1
        %s235 = scalar_lea.vmem [#allocation5], %s234
        // Predicated region
        $region37: #{tpu_custom_call.1} parent=31 // pred_check
          %p236 = pneg %p84
        $region38: #{tpu_custom_call.1} parent=31 // pred_check_branch
          %238 = sbr.rel (%p236) target = $region40
        $region39: #{tpu_custom_call.1} parent=31 // pred_region
          %240 = dma.done %s233, 16
        $region40: #{tpu_custom_call.1} parent=31 // pred_fallthru
          _
        %s241 = sand.u32 %s23, 1
        %s242 = scalar_lea.sflag [#allocation6], %s241
        %s243 = sand.u32 %s97, 1
        %s244 = scalar_lea.vmem [#allocation7], %s243
        // Predicated region
        $region41: #{tpu_custom_call.1} parent=31 // pred_check
          %p245 = pneg %p110
        $region42: #{tpu_custom_call.1} parent=31 // pred_check_branch
          %247 = sbr.rel (%p245) target = $region44
        $region43: #{tpu_custom_call.1} parent=31 // pred_region
          %249 = dma.done %s242, 16
        $region44: #{tpu_custom_call.1} parent=31 // pred_fallthru
          _
        %s250 = sand.u32 %s45, 1
        %s251 = scalar_lea.sflag [#allocation3], %s250
        %s252 = sand.u32 %s45, 1
        %s253 = smul.addr %s252, 32
        %s254 = scalar_lea.vmem [#allocation2], %s253
        %p255 = pneg %p58
        %p256 = pneg %p55
        %s257 = sand.u32 %s23, 1
        %s258 = scalar_lea.sflag [#allocation6], %s257
        %s259 = sand.u32 %s71, 1
        %s260 = scalar_lea.vmem [#allocation5], %s259
        %p261 = pneg %p84
        %p262 = pneg %p81
        %s263 = sand.u32 %s23, 1
        %s264 = scalar_lea.sflag [#allocation6], %s263
        %s265 = sand.u32 %s97, 1
        %s266 = scalar_lea.vmem [#allocation7], %s265
        %p267 = pneg %p110
        %p268 = pneg %p107
        %p269 = pneg %p138
        %p270 = pneg %p135
        %s271 = sand.u32 %s125, 1
        %s272 = scalar_lea.sflag [#allocation4], %s271
        %s273 = sand.u32 %s125, 1
        %s274 = smul.addr %s273, 16
        %s275 = scalar_lea.vmem [#allocation8], %s274
        %s276 = smul.u32 4, %s28
        %s277 = smul.u32 4, %s28
        %v278 = vld [vmem:[%s226] sm:$0xff]
        %v279 = vld [vmem:[%s226 + $0x8] sm:$0xff]
        %v280 = vld [vmem:[%s226 + $0x10] sm:$0xff]
        %v281 = vld [vmem:[%s226 + $0x18] sm:$0xff]
        %282 = vadd.xlane.f32.xlu0 %v278
        %v283 = vpop.xlane.xlu0 %282
        %284 = vadd.xlane.f32.xlu0 %v279
        %v285 = vpop.xlane.xlu0 %284
        %286 = vadd.xlane.f32.xlu0 %v280
        %v287 = vpop.xlane.xlu0 %286
        %288 = vadd.xlane.f32.xlu0 %v281
        %v289 = vpop.xlane.xlu0 %288
        %v290 = vmul.f32 %v283, 0.0078125
        %v291 = vmul.f32 %v285, 0.0078125
        %v292 = vmul.f32 %v287, 0.0078125
        %v293 = vmul.f32 %v289, 0.0078125
        %v294 = vmul.f32 %v278, %v278
        %v295 = vmul.f32 %v279, %v279
        %v296 = vmul.f32 %v280, %v280
        %v297 = vmul.f32 %v281, %v281
        %298 = vadd.xlane.f32.xlu0 %v294
        %v299 = vpop.xlane.xlu0 %298
        %300 = vadd.xlane.f32.xlu0 %v295
        %v301 = vpop.xlane.xlu0 %300
        %302 = vadd.xlane.f32.xlu0 %v296
        %v303 = vpop.xlane.xlu0 %302
        %304 = vadd.xlane.f32.xlu0 %v297
        %v305 = vpop.xlane.xlu0 %304
        %v306 = vmul.f32 %v299, 0.0078125
        %v307 = vmul.f32 %v301, 0.0078125
        %v308 = vmul.f32 %v303, 0.0078125
        %v309 = vmul.f32 %v305, 0.0078125
        %v310 = vmul.f32 %v290, %v290
        %v311 = vmul.f32 %v291, %v291
        %v312 = vmul.f32 %v292, %v292
        %v313 = vmul.f32 %v293, %v293
        %v314 = vsub.f32 %v306, %v310
        %v315 = vsub.f32 %v307, %v311
        %v316 = vsub.f32 %v308, %v312
        %v317 = vsub.f32 %v309, %v313
        %v318 = vmax.f32 %v314, 0.0
        %v319 = vmax.f32 %v315, 0.0
        %v320 = vmax.f32 %v316, 0.0
        %v321 = vmax.f32 %v317, 0.0
        %v322 = vsub.f32 %v278, %v290
        %v323 = vsub.f32 %v279, %v291
        %v324 = vsub.f32 %v280, %v292
        %v325 = vsub.f32 %v281, %v293
        %v326 = vadd.f32 %v318, 1e-06
        %v327 = vadd.f32 %v319, 1e-06
        %v328 = vadd.f32 %v320, 1e-06
        %v329 = vadd.f32 %v321, 1e-06
        %v330 = vrsqrt.pop %v326
        %v331 = vmul.f32 %v330, %v326
        %v332 = vmul.f32 %v331, %v330
        %v333 = vmul.f32 0.5, %v332
        %v334 = vsub.f32 1.5, %v333
        %v335 = vmul.f32 %v330, %v334
        %vm336 = vweird.f32 %v326
        %vm337 = vweird.f32 %v330
        %vm338 = vmor %vm336, %vm337
        %v339 = vsel %vm338, %v330, %v335
        %v340 = vrsqrt.pop %v327
        %v341 = vmul.f32 %v340, %v327
        %v342 = vmul.f32 %v341, %v340
        %v343 = vmul.f32 0.5, %v342
        %v344 = vsub.f32 1.5, %v343
        %v345 = vmul.f32 %v340, %v344
        %vm346 = vweird.f32 %v327
        %vm347 = vweird.f32 %v340
        %vm348 = vmor %vm346, %vm347
        %v349 = vsel %vm348, %v340, %v345
        %v350 = vrsqrt.pop %v328
        %v351 = vmul.f32 %v350, %v328
        %v352 = vmul.f32 %v351, %v350
        %v353 = vmul.f32 0.5, %v352
        %v354 = vsub.f32 1.5, %v353
        %v355 = vmul.f32 %v350, %v354
        %vm356 = vweird.f32 %v328
        %vm357 = vweird.f32 %v350
        %vm358 = vmor %vm356, %vm357
        %v359 = vsel %vm358, %v350, %v355
        %v360 = vrsqrt.pop %v329
        %v361 = vmul.f32 %v360, %v329
        %v362 = vmul.f32 %v361, %v360
        %v363 = vmul.f32 0.5, %v362
        %v364 = vsub.f32 1.5, %v363
        %v365 = vmul.f32 %v360, %v364
        %vm366 = vweird.f32 %v329
        %vm367 = vweird.f32 %v360
        %vm368 = vmor %vm366, %vm367
        %v369 = vsel %vm368, %v360, %v365
        %v370 = vmul.f32 %v322, %v339
        %v371 = vmul.f32 %v323, %v349
        %v372 = vmul.f32 %v324, %v359
        %v373 = vmul.f32 %v325, %v369
        %v374 = vld [vmem:[%s244] sm:$0x1]
        %v375 = vadd.f32 %v374, 1.0
        %v377 = vperm.slane %v375, 0
        %v379 = vmul.f32 %v370, %v377
        %v380 = vmul.f32 %v371, %v377
        %v381 = vmul.f32 %v372, %v377
        %v382 = vmul.f32 %v373, %v377
        %v383 = vld [vmem:[%s235] sm:$0x1]
        %v385 = vperm.slane %v383, 0
        %v387 = vadd.f32 %v379, %v385
        %v388 = vadd.f32 %v380, %v385
        %v389 = vadd.f32 %v381, %v385
        %v390 = vadd.f32 %v382, %v385
        %v391 = vpack.c.bf16 %v387, %v387
        %v392 = vpack.c.bf16 %v388, %v388
        %v393 = vpack.c.bf16 %v389, %v389
        %v394 = vpack.c.bf16 %v390, %v390
        %395 = vst [vmem:[%s275] sm:$0xf] %v391
        %396 = vst [vmem:[%s275 + $0x4] sm:$0xf] %v392
        %397 = vst [vmem:[%s275 + $0x8] sm:$0xf] %v393
        %398 = vst [vmem:[%s275 + $0xc] sm:$0xf] %v394
        %s399 = sand.u32 %s125, 1
        %s400 = scalar_lea.sflag [#allocation4], %s399
        %s401 = sand.u32 %s125, 1
        %s402 = smul.addr %s401, 16
        %s403 = scalar_lea.vmem [#allocation8], %s402
        // Predicated region
        $region45: #{tpu_custom_call.1} parent=31 // pred_check
          %p404 = pneg %p135
        $region46: #{tpu_custom_call.1} parent=31 // pred_check_branch
          %406 = sbr.rel (%p404) target = $region48
        $region47: #{tpu_custom_call.1} parent=31 // pred_region
          %s407 = smul.u32 4, %s28
          %409 = vsyncadd %s400, 0
          %s410 = smul.addr %s27, 4
          %s411 = sadd.s32 %s407, %s410
          %s412 = smul.addr %s411, 4
          %s413 = scalar_lea.hbm %s3, %s412
          %s414 = sshll.u32 %s403, 4
          %s415 = int_to_ptr.vmem [resolvable:$true] %s414
          %s416 = sshll.u32 %s413, 4
          %s417 = int_to_ptr.hbm [resolvable:$true] %s416
          %422 = dma.vmem_to_hbm [thread:$0]  %s415, 256, %s417, %s400, 64, 64, 4
        $region48: #{tpu_custom_call.1} parent=31 // pred_fallthru
          _
      $region32: #{tpu_custom_call.1} parent=5 // pred_fallthru
        _
      %p423 = scmp.le.s32.totalorder 2, %s18
      // Predicated region
      $region49: #{tpu_custom_call.1} parent=5 // pred_check
        %p424 = pneg %p423
      $region50: #{tpu_custom_call.1} parent=5 // pred_check_branch
        %426 = sbr.rel (%p424) target = $region52
      $region51: #{tpu_custom_call.1} parent=5 // pred_region
        %s427 = ssub.s32 %s18, 2
        // Predicated region
        $region53: #{tpu_custom_call.1} parent=51 // pred_check
          %p428 = pneg %p141
        $region54: #{tpu_custom_call.1} parent=51 // pred_check_branch
          %430 = sbr.rel (%p428) target = $region56
        $region55: #{tpu_custom_call.1} parent=51 // pred_region
          %s431 = sand.u32 %s126, 1
          %s432 = scalar_lea.sflag [#allocation4], %s431
          %s433 = sand.u32 %s126, 1
          %s434 = smul.addr %s433, 16
          %s435 = scalar_lea.vmem [#allocation8], %s434
          %437 = dma.done %s432, 256
        $region56: #{tpu_custom_call.1} parent=51 // pred_fallthru
          _
      $region52: #{tpu_custom_call.1} parent=5 // pred_fallthru
        _
    $region6: #{tpu_custom_call.1} parent=1 // loop_footer
      %s22 = sadd.s32 1, %s18
    $region7: #{tpu_custom_call.1} parent=1 // loop_footer_branch
      %17 = sbr.rel target = $region3
    $region8: #{tpu_custom_call.1} parent=1 // loop_exit
      _
    %438 = vsyncpa [#allocation3], 1
    %s439 = scalar_lea.sflag [#allocation3], 1
    %440 = vsyncpa %s439, 1
    %441 = vsyncpa [#allocation6], 1
    %s442 = scalar_lea.sflag [#allocation6], 1
    %443 = vsyncpa %s442, 1
    %444 = vsyncpa [#allocation4], 1
    %s445 = scalar_lea.sflag [#allocation4], 1
    %446 = vsyncpa %s445, 1

</llo_original>
